<compile_context>
chip_gen: v7x
topology: tpu7x:2x2x1
jax: 0.10.0
libtpu: 0.0.40
codegen_flags: <defaults>
</compile_context>

<pallas_src>
import functools

import jax
import jax.numpy as jnp
from jax.experimental import pallas as pl
from jax.experimental.pallas import tpu as pltpu


# ----------------------------------------------------------------------------
# Plain-JAX glue: FPS + gathers (data-dependent / sequential -> not Pallas).
# ----------------------------------------------------------------------------
def farthest_point_sample(xyz, npoint):
    """xyz: (B, N, 3) -> (B, npoint) int32 indices.
    NOTE: the PyTorch reference starts from a random index (torch.randint);
    we use a deterministic start index 0."""
    B, N, _ = xyz.shape

    def body(i, carry):
        centroids, distance, farthest = carry
        centroids = centroids.at[:, i].set(farthest)
        centroid = jax.vmap(lambda p, f: p[f])(xyz, farthest)[:, None, :]  # (B,1,3)
        dist = jnp.sum((xyz - centroid) ** 2, axis=-1)                      # (B,N)
        distance = jnp.minimum(distance, dist)
        farthest = jnp.argmax(distance, axis=-1).astype(jnp.int32)
        return centroids, distance, farthest

    centroids = jnp.zeros((B, npoint), dtype=jnp.int32)
    distance = jnp.full((B, N), 1e10, dtype=xyz.dtype)
    farthest = jnp.zeros((B,), dtype=jnp.int32)
    centroids, _, _ = jax.lax.fori_loop(0, npoint, body,
                                        (centroids, distance, farthest))
    return centroids


def index_points(points, idx):
    """points: (B, N, C), idx: (B, ...) int -> (B, ..., C)"""
    return jax.vmap(lambda p, i: p[i])(points, idx)


# ----------------------------------------------------------------------------
# Pallas kernel 1: pairwise squared distances (for kNN), pure VPU, tiled over N.
# ----------------------------------------------------------------------------
def _sqdist_kernel(q_ref, pt_ref, o_ref):
    q = q_ref[0]                     # (S, 3)   sampled centroids
    pt = pt_ref[0]                   # (3, TN)  reference points, coords on sublanes
    d = q[:, 0:1] - pt[0:1, :]       # (S, TN) via lane/sublane broadcast
    acc = d * d
    for c in (1, 2):                 # 3 unrolled FMA sweeps; no MXU, no XLU transpose
        d = q[:, c:c + 1] - pt[c:c + 1, :]
        acc = acc + d * d
    o_ref[0] = acc


def pairwise_sqdist(new_xyz, xyz, *, tn=1024):
    """new_xyz: (B, S, 3), xyz: (B, N, 3) -> (B, S, N) squared distances."""
    B, S, _ = new_xyz.shape
    N = xyz.shape[1]
    if N <= tn:
        TN, Np = N, N
    else:
        TN = tn                               # must be a multiple of 128
        Np = pl.cdiv(N, TN) * TN
    xyz_p = xyz if Np == N else jnp.pad(xyz, ((0, 0), (0, Np - N), (0, 0)))
    xyz_t = jnp.transpose(xyz_p, (0, 2, 1))   # (B, 3, Np): hoist transpose out of kernel
    out = pl.pallas_call(
        _sqdist_kernel,
        out_shape=jax.ShapeDtypeStruct((B, S, Np), jnp.float32),
        grid=(B, Np // TN),
        in_specs=[pl.BlockSpec((1, S, 3), lambda b, n: (b, 0, 0)),
                  pl.BlockSpec((1, 3, TN), lambda b, n: (b, 0, n))],
        out_specs=pl.BlockSpec((1, S, TN), lambda b, n: (b, 0, n)),
        compiler_params=pltpu.CompilerParams(
            dimension_semantics=("parallel", "parallel")),
    )(new_xyz.astype(jnp.float32), xyz_t.astype(jnp.float32))
    return out[:, :, :N]


# ----------------------------------------------------------------------------
# Pallas kernel 2: fused [1x1 conv + folded BN + ReLU] x 2 + max over neighbors,
# batched over TP sampled points per grid step.
# ----------------------------------------------------------------------------
def _mlp_max_kernel(x_ref, w1_ref, b1_ref, w2_ref, b2_ref, o_ref):
    TP, C2 = o_ref.shape
    K = x_ref.shape[0] // TP
    x = x_ref[...]                                            # (TP*K, Cin) bf16
    h1 = jnp.dot(x, w1_ref[...], preferred_element_type=jnp.float32)
    h1 = jnp.maximum(h1 + b1_ref[...], 0.0)                   # (TP*K, C1) f32
    h2 = jnp.dot(h1.astype(w2_ref.dtype), w2_ref[...],
                 preferred_element_type=jnp.float32)
    h2 = jnp.maximum(h2 + b2_ref[...], 0.0)                   # (TP*K, C2) f32
    o_ref[...] = jnp.max(h2.reshape(TP, K, C2), axis=1)       # (TP, C2)


def mlp_max(x_grouped, w1f, b1f, w2f, b2f, *, tp=128):
    """x_grouped: (P, K, Cin) -> (P, C2) = max_k relu(bn2(conv2(relu(bn1(conv1(x))))))."""
    P, K, Cin = x_grouped.shape
    C1 = w1f.shape[1]
    C2 = w2f.shape[1]

    # Pad Cin to a multiple of 8 (layout-clean flatten), P to a multiple of TP.
    Cin_p = pl.cdiv(Cin, 8) * 8
    if Cin_p != Cin:
        x_grouped = jnp.pad(x_grouped, ((0, 0), (0, 0), (0, Cin_p - Cin)))
        w1f = jnp.pad(w1f, ((0, Cin_p - Cin), (0, 0)))
    TP = min(tp, P)
    P_p = pl.cdiv(P, TP) * TP
    if P_p != P:
        x_grouped = jnp.pad(x_grouped, ((0, P_p - P), (0, 0), (0, 0)))

    # Flatten (P_p, K, Cin_p) -> (P_p*K, Cin_p) in the wrapper (free, row-major)
    # and cast the streaming input + weights to bf16 (halves DMA bytes, 2x MXU);
    # accumulation stays f32 inside the kernel.
    x2d = x_grouped.reshape(P_p * K, Cin_p).astype(jnp.bfloat16)
    w1_bf = w1f.astype(jnp.bfloat16)
    w2_bf = w2f.astype(jnp.bfloat16)
    b1 = b1f.astype(jnp.float32).reshape(1, C1)
    b2 = b2f.astype(jnp.float32).reshape(1, C2)

    out = pl.pallas_call(
        _mlp_max_kernel,
        out_shape=jax.ShapeDtypeStruct((P_p, C2), jnp.float32),
        grid=(P_p // TP,),
        in_specs=[
            pl.BlockSpec((TP * K, Cin_p), lambda i: (i, 0)),
            pl.BlockSpec((Cin_p, C1), lambda i: (0, 0)),   # resident (constant block)
            pl.BlockSpec((1, C1), lambda i: (0, 0)),
            pl.BlockSpec((C1, C2), lambda i: (0, 0)),
            pl.BlockSpec((1, C2), lambda i: (0, 0)),
        ],
        out_specs=pl.BlockSpec((TP, C2), lambda i: (i, 0)),
        compiler_params=pltpu.CompilerParams(
            dimension_semantics=("parallel",)),
    )(x2d, w1_bf, b1, w2_bf, b2)
    return out[:P]


# ----------------------------------------------------------------------------
# Parameter setup (deterministic, PyTorch-default-like init) + BN folding.
# ----------------------------------------------------------------------------
def fold_conv_bn(W, b, gamma, beta, mean, var, eps=1e-5):
    """Fold eval-mode BatchNorm2d into the preceding 1x1 Conv2d.
    W: (Cout, Cin), b: (Cout,). Returns ((Cin, Cout) weight, (1, Cout) bias)."""
    scale = gamma / jnp.sqrt(var + eps)
    Wf = (W * scale[:, None]).T
    bf = (b - mean) * scale + beta
    return Wf.astype(jnp.float32), bf[None, :].astype(jnp.float32)


def init_params(key, channels):
    # TODO(synk): training-mode BatchNorm (batch statistics) not implemented;
    # eval-mode running stats (mean=0, var=1, gamma=1, beta=0) are folded in.
    cin, c1, c2 = channels
    ks = jax.random.split(key, 4)

    def conv_init(kw, kb, cout, cin_):
        bound = 1.0 / jnp.sqrt(jnp.float32(cin_))
        W = jax.random.uniform(kw, (cout, cin_), jnp.float32, -bound, bound)
        b = jax.random.uniform(kb, (cout,), jnp.float32, -bound, bound)
        return W, b

    W1, b1 = conv_init(ks[0], ks[1], c1, cin)
    W2, b2 = conv_init(ks[2], ks[3], c2, c1)
    return dict(
        W1=W1, b1=b1, g1=jnp.ones((c1,)), be1=jnp.zeros((c1,)),
        m1=jnp.zeros((c1,)), v1=jnp.ones((c1,)),
        W2=W2, b2=b2, g2=jnp.ones((c2,)), be2=jnp.zeros((c2,)),
        m2=jnp.zeros((c2,)), v2=jnp.ones((c2,)),
    )


# ----------------------------------------------------------------------------
# TransitionDown forward.
# ----------------------------------------------------------------------------
def sample_and_group_knn(xyz, points, npoint, nsample):
    fps_idx = farthest_point_sample(xyz, npoint)              # (B, S)
    new_xyz = index_points(xyz, fps_idx)                      # (B, S, 3)
    dists = pairwise_sqdist(new_xyz, xyz)                     # (B, S, N)  [Pallas]
    _, idx = jax.lax.top_k(-dists, nsample)                   # (B, S, K)  smallest dists
    grouped_xyz = index_points(xyz, idx)                      # (B, S, K, 3)
    grouped_xyz_norm = grouped_xyz - new_xyz[:, :, None, :]
    grouped_points = index_points(points, idx)                # (B, S, K, D)
    new_points = jnp.concatenate([grouped_xyz_norm, grouped_points], axis=-1)
    return new_xyz, new_points                                # (B,S,3), (B,S,K,3+D)


def transition_down(xyz, points, params, *, npoint, nsample, tp=128):
    new_xyz, grouped = sample_and_group_knn(xyz, points, npoint, nsample)
    B = xyz.shape[0]
    cin = grouped.shape[-1]
    x = grouped.reshape(B * npoint, nsample, cin)
    w1f, b1f = fold_conv_bn(params["W1"], params["b1"], params["g1"],
                            params["be1"], params["m1"], params["v1"])
    w2f, b2f = fold_conv_bn(params["W2"], params["b2"], params["g2"],
                            params["be2"], params["m2"], params["v2"])
    feats = mlp_max(x, w1f, b1f, w2f, b2f, tp=tp)             # (P, C2)  [Pallas]
    return new_xyz, feats.reshape(B, npoint, -1)


# ----------------------------------------------------------------------------
if __name__ == "__main__":
    key = jax.random.PRNGKey(0)
    B, N = 2, 16
    k_npoint = 4          # k        (number of sampled points)
    nneighbor = 8         # nsample  (kNN group size)
    d_points = 16
    channels = [d_points + 3, 32, 32]   # TransitionDown(channels=[...])

    kx, kp, kw = jax.random.split(key, 3)
    xyz = jax.random.normal(kx, (B, N, 3), jnp.float32)
    points = jax.random.normal(kp, (B, N, d_points), jnp.float32)
    params = init_params(kw, channels)

    fwd = jax.jit(functools.partial(transition_down,
                                    npoint=k_npoint, nsample=nneighbor))
    new_xyz, new_feats = fwd(xyz, points, params)
    jax.block_until_ready((new_xyz, new_feats))
    assert new_xyz.shape == (B, k_npoint, 3)
    assert new_feats.shape == (B, k_npoint, channels[-1])

    # --- correctness checks against plain-JAX references ----------------------
    new_xyz_r, grouped = sample_and_group_knn(xyz, points, k_npoint, nneighbor)
    assert jnp.allclose(new_xyz, new_xyz_r, atol=1e-5, rtol=1e-5)

    # Distance kernel vs dense reference.
    d_ref = jnp.sum((new_xyz_r[:, :, None, :] - xyz[:, None, :, :]) ** 2, axis=-1)
    d_pal = pairwise_sqdist(new_xyz_r, xyz)
    assert jnp.allclose(d_pal, d_ref, atol=1e-4, rtol=1e-4)

    # Fused MLP + max vs bf16-matched plain-JAX reference.
    w1f, b1f = fold_conv_bn(params["W1"], params["b1"], params["g1"],
                            params["be1"], params["m1"], params["v1"])
    w2f, b2f = fold_conv_bn(params["W2"], params["b2"], params["g2"],
                            params["be2"], params["m2"], params["v2"])
    g = grouped.reshape(B * k_npoint, nneighbor, -1)
    bfr = lambda a: a.astype(jnp.bfloat16).astype(jnp.float32)
    h1 = jnp.maximum(jnp.einsum("pkc,cd->pkd", bfr(g), bfr(w1f)) + b1f, 0.0)
    h2 = jnp.maximum(jnp.einsum("pkc,cd->pkd", bfr(h1), bfr(w2f)) + b2f, 0.0)
    ref = jnp.max(h2, axis=1).reshape(B, k_npoint, -1)
    assert jnp.allclose(new_feats, ref, atol=2e-2, rtol=2e-2), (
        float(jnp.max(jnp.abs(new_feats - ref))))

    print("KERNEL_OK")
</pallas_src>

<mosaic_0001>
module attributes {stable_mosaic.version = 11 : i64} {
  func.func @_sqdist_kernel(%arg0: i32, %arg1: i32, %arg2: memref<1x4x3xf32, #tpu.memory_space<vmem>>, %arg3: memref<1x3x16xf32, #tpu.memory_space<vmem>>, %arg4: memref<1x4x16xf32, #tpu.memory_space<vmem>>) attributes {dimension_semantics = [#tpu.dimension_semantics<parallel>, #tpu.dimension_semantics<parallel>], iteration_bounds = array<i64: 2, 1>, scalar_prefetch = 0 : i64, scratch_operands = 0 : i64, tpu.core_type = #tpu.core_type<tc>, window_params = [{transform_indices = @transform_0, window_bounds = array<i64: 1, 4, 3>}, {transform_indices = @transform_1, window_bounds = array<i64: 1, 3, 16>}, {transform_indices = @transform_2, window_bounds = array<i64: 1, 4, 16>}]} {
    %c0 = arith.constant 0 : index
    %c0_0 = arith.constant 0 : index
    %c0_1 = arith.constant 0 : index
    %0 = vector.load %arg2[%c0, %c0_0, %c0_1] : memref<1x4x3xf32, #tpu.memory_space<vmem>>, vector<1x4x3xf32>
    %1 = vector.shape_cast %0 : vector<1x4x3xf32> to vector<4x3xf32>
    %c0_2 = arith.constant 0 : index
    %c0_3 = arith.constant 0 : index
    %c0_4 = arith.constant 0 : index
    %2 = vector.load %arg3[%c0_2, %c0_3, %c0_4] : memref<1x3x16xf32, #tpu.memory_space<vmem>>, vector<1x3x16xf32>
    %3 = vector.shape_cast %2 : vector<1x3x16xf32> to vector<3x16xf32>
    %4 = vector.extract_strided_slice %1 {offsets = [0, 0], sizes = [4, 1], strides = [1, 1]} : vector<4x3xf32> to vector<4x1xf32>
    %5 = vector.extract_strided_slice %3 {offsets = [0, 0], sizes = [1, 16], strides = [1, 1]} : vector<3x16xf32> to vector<1x16xf32>
    %6 = vector.broadcast %4 : vector<4x1xf32> to vector<4x16xf32>
    %7 = vector.broadcast %5 : vector<1x16xf32> to vector<4x16xf32>
    %8 = arith.subf %6, %7 : vector<4x16xf32>
    %9 = arith.mulf %8, %8 : vector<4x16xf32>
    %10 = vector.extract_strided_slice %1 {offsets = [0, 1], sizes = [4, 1], strides = [1, 1]} : vector<4x3xf32> to vector<4x1xf32>
    %11 = vector.extract_strided_slice %3 {offsets = [1, 0], sizes = [1, 16], strides = [1, 1]} : vector<3x16xf32> to vector<1x16xf32>
    %12 = vector.broadcast %10 : vector<4x1xf32> to vector<4x16xf32>
    %13 = vector.broadcast %11 : vector<1x16xf32> to vector<4x16xf32>
    %14 = arith.subf %12, %13 : vector<4x16xf32>
    %15 = arith.mulf %14, %14 : vector<4x16xf32>
    %16 = arith.addf %9, %15 : vector<4x16xf32>
    %17 = vector.extract_strided_slice %1 {offsets = [0, 2], sizes = [4, 1], strides = [1, 1]} : vector<4x3xf32> to vector<4x1xf32>
    %18 = vector.extract_strided_slice %3 {offsets = [2, 0], sizes = [1, 16], strides = [1, 1]} : vector<3x16xf32> to vector<1x16xf32>
    %19 = vector.broadcast %17 : vector<4x1xf32> to vector<4x16xf32>
    %20 = vector.broadcast %18 : vector<1x16xf32> to vector<4x16xf32>
    %21 = arith.subf %19, %20 : vector<4x16xf32>
    %22 = arith.mulf %21, %21 : vector<4x16xf32>
    %23 = arith.addf %16, %22 : vector<4x16xf32>
    %c0_5 = arith.constant 0 : index
    %c0_6 = arith.constant 0 : index
    %c0_7 = arith.constant 0 : index
    %24 = vector.load %arg4[%c0_5, %c0_6, %c0_7] : memref<1x4x16xf32, #tpu.memory_space<vmem>>, vector<1x4x16xf32>
    %25 = vector.shape_cast %24 : vector<1x4x16xf32> to vector<4x16xf32>
    %26 = vector.shape_cast %23 : vector<4x16xf32> to vector<1x4x16xf32>
    tpu.vector_store %arg4[%c0_5, %c0_6, %c0_7], %26 {strides = array<i32>} : memref<1x4x16xf32, #tpu.memory_space<vmem>>, vector<1x4x16xf32>,
    return
  }
  func.func @transform_0(%arg0: i32, %arg1: i32) -> (i32, i32, i32) {
    %c0_i32 = arith.constant 0 : i32
    %c0_i32_0 = arith.constant 0 : i32
    %c0_i32_1 = arith.constant 0 : i32
    return %arg0, %c0_i32, %c0_i32_0 : i32, i32, i32
  }
  func.func @transform_1(%arg0: i32, %arg1: i32) -> (i32, i32, i32) {
    %c0_i32 = arith.constant 0 : i32
    %c0_i32_0 = arith.constant 0 : i32
    return %arg0, %c0_i32, %arg1 : i32, i32, i32
  }
  func.func @transform_2(%arg0: i32, %arg1: i32) -> (i32, i32, i32) {
    %c0_i32 = arith.constant 0 : i32
    %c0_i32_0 = arith.constant 0 : i32
    return %arg0, %c0_i32, %arg1 : i32, i32, i32
  }
}

module attributes {stable_mosaic.version = 11 : i64} {
  func.func @_mlp_max_kernel(%arg0: i32, %arg1: memref<64x24xbf16, #tpu.memory_space<vmem>>, %arg2: memref<24x32xbf16, #tpu.memory_space<vmem>>, %arg3: memref<1x32xf32, #tpu.memory_space<vmem>>, %arg4: memref<32x32xbf16, #tpu.memory_space<vmem>>, %arg5: memref<1x32xf32, #tpu.memory_space<vmem>>, %arg6: memref<8x32xf32, #tpu.memory_space<vmem>>) attributes {dimension_semantics = [#tpu.dimension_semantics<parallel>], iteration_bounds = array<i64: 1>, scalar_prefetch = 0 : i64, scratch_operands = 0 : i64, tpu.core_type = #tpu.core_type<tc>, window_params = [{transform_indices = @transform_0, window_bounds = array<i64: 64, 24>}, {pipeline_mode = #tpu.pipeline_mode<synchronous>, transform_indices = @transform_1, window_bounds = array<i64: 24, 32>}, {pipeline_mode = #tpu.pipeline_mode<synchronous>, transform_indices = @transform_2, window_bounds = array<i64: 1, 32>}, {pipeline_mode = #tpu.pipeline_mode<synchronous>, transform_indices = @transform_3, window_bounds = array<i64: 32, 32>}, {pipeline_mode = #tpu.pipeline_mode<synchronous>, transform_indices = @transform_4, window_bounds = array<i64: 1, 32>}, {transform_indices = @transform_5, window_bounds = array<i64: 8, 32>}]} {
    %c0 = arith.constant 0 : index
    %c0_0 = arith.constant 0 : index
    %0 = vector.load %arg1[%c0, %c0_0] : memref<64x24xbf16, #tpu.memory_space<vmem>>, vector<64x24xbf16>
    %c0_1 = arith.constant 0 : index
    %c0_2 = arith.constant 0 : index
    %1 = vector.load %arg2[%c0_1, %c0_2] : memref<24x32xbf16, #tpu.memory_space<vmem>>, vector<24x32xbf16>
    %cst = arith.constant dense<0.000000e+00> : vector<64x32xf32>
    %2 = tpu.matmul %0, %1, %cst {dimension_numbers = #tpu.dot_dimension_numbers<[1], [0], [0], [1], [0, 0, 1, 1], [], []>} : vector<64x24xbf16>, vector<24x32xbf16>, vector<64x32xf32> -> vector<64x32xf32>
    %c0_3 = arith.constant 0 : index
    %c0_4 = arith.constant 0 : index
    %3 = vector.load %arg3[%c0_3, %c0_4] : memref<1x32xf32, #tpu.memory_space<vmem>>, vector<1x32xf32>
    %4 = vector.broadcast %3 : vector<1x32xf32> to vector<64x32xf32>
    %5 = arith.addf %2, %4 : vector<64x32xf32>
    %cst_5 = arith.constant 0.000000e+00 : f32
    %6 = vector.broadcast %cst_5 : f32 to vector<64x32xf32>
    %7 = arith.maximumf %5, %6 : vector<64x32xf32>
    %8 = arith.truncf %7 : vector<64x32xf32> to vector<64x32xbf16>
    %c0_6 = arith.constant 0 : index
    %c0_7 = arith.constant 0 : index
    %9 = vector.load %arg4[%c0_6, %c0_7] : memref<32x32xbf16, #tpu.memory_space<vmem>>, vector<32x32xbf16>
    %cst_8 = arith.constant dense<0.000000e+00> : vector<64x32xf32>
    %10 = tpu.matmul %8, %9, %cst_8 {dimension_numbers = #tpu.dot_dimension_numbers<[1], [0], [0], [1], [0, 0, 1, 1], [], []>} : vector<64x32xbf16>, vector<32x32xbf16>, vector<64x32xf32> -> vector<64x32xf32>
    %c0_9 = arith.constant 0 : index
    %c0_10 = arith.constant 0 : index
    %11 = vector.load %arg5[%c0_9, %c0_10] : memref<1x32xf32, #tpu.memory_space<vmem>>, vector<1x32xf32>
    %12 = vector.broadcast %11 : vector<1x32xf32> to vector<64x32xf32>
    %13 = arith.addf %10, %12 : vector<64x32xf32>
    %cst_11 = arith.constant 0.000000e+00 : f32
    %14 = vector.broadcast %cst_11 : f32 to vector<64x32xf32>
    %15 = arith.maximumf %13, %14 : vector<64x32xf32>
    %16 = vector.shape_cast %15 : vector<64x32xf32> to vector<8x8x32xf32>
    %cst_12 = arith.constant dense<0xFF800000> : vector<8x32xf32>
    %17 = vector.multi_reduction <maximumf>, %16, %cst_12 [1] : vector<8x8x32xf32> to vector<8x32xf32>
    %c0_13 = arith.constant 0 : index
    %c0_14 = arith.constant 0 : index
    %18 = vector.load %arg6[%c0_13, %c0_14] : memref<8x32xf32, #tpu.memory_space<vmem>>, vector<8x32xf32>
    tpu.vector_store %arg6[%c0_13, %c0_14], %17 {strides = array<i32>} : memref<8x32xf32, #tpu.memory_space<vmem>>, vector<8x32xf32>,
    return
  }
  func.func @transform_0(%arg0: i32) -> (i32, i32) {
    %c0_i32 = arith.constant 0 : i32
    %c0_i32_0 = arith.constant 0 : i32
    return %arg0, %c0_i32 : i32, i32
  }
  func.func @transform_1(%arg0: i32) -> (i32, i32) {
    %c0_i32 = arith.constant 0 : i32
    %c0_i32_0 = arith.constant 0 : i32
    %c0_i32_1 = arith.constant 0 : i32
    return %c0_i32, %c0_i32_0 : i32, i32
  }
  func.func @transform_2(%arg0: i32) -> (i32, i32) {
    %c0_i32 = arith.constant 0 : i32
    %c0_i32_0 = arith.constant 0 : i32
    %c0_i32_1 = arith.constant 0 : i32
    return %c0_i32, %c0_i32_0 : i32, i32
  }
  func.func @transform_3(%arg0: i32) -> (i32, i32) {
    %c0_i32 = arith.constant 0 : i32
    %c0_i32_0 = arith.constant 0 : i32
    %c0_i32_1 = arith.constant 0 : i32
    return %c0_i32, %c0_i32_0 : i32, i32
  }
  func.func @transform_4(%arg0: i32) -> (i32, i32) {
    %c0_i32 = arith.constant 0 : i32
    %c0_i32_0 = arith.constant 0 : i32
    %c0_i32_1 = arith.constant 0 : i32
    return %c0_i32, %c0_i32_0 : i32, i32
  }
  func.func @transform_5(%arg0: i32) -> (i32, i32) {
    %c0_i32 = arith.constant 0 : i32
    %c0_i32_0 = arith.constant 0 : i32
    return %arg0, %c0_i32 : i32, i32
  }
}

</mosaic_0001>

<llo_original>
// kernel: custom-call.8
$region0: #{custom-call.8}
  %s0 = inlined_call_operand.vmem [shape: f32[2,16], index: 0, kind: output, shape index: {}]

// kernel: neg.1
$region0: #{neg.1}
  #allocation0 [shape = 's32[1]{0}', space=sflag, size = 0x4, scoped, tag = 'scoped memory for neg.1']
  %s0 = inlined_call_operand.vmem [shape: f32[2,4,16], index: 0, kind: input, shape index: {}]
  %s1 = inlined_call_operand.vmem [shape: f32[2,4,16], index: 1, kind: output, shape index: {}]
  %v2 = vld [vmem:[%s0] sm:$0xf]
  %3 = xla_tuple %v2
  %4 = xla_tuple %3
  %v5 = vxor.u32 %v2, 2147483648
  %6 = xla_tuple %v5
  %7 = vst [vmem:[%s1] sm:$0xf] %v5
  %s8 = scalar_lea.vmem %s0, 4
  %v9 = vld [vmem:[%s8] sm:$0xf]
  %10 = xla_tuple %v9
  %11 = xla_tuple %10
  %v12 = vxor.u32 %v9, 2147483648
  %13 = xla_tuple %v12
  %s14 = scalar_lea.vmem %s1, 4
  %15 = vst [vmem:[%s14] sm:$0xf] %v12

// kernel: transition_down.2
$region0: #{transition_down.2}
  #allocation0 [shape = 'u32[]', space=smem, size = 0x4, offset = 0x4, fixed_abs, tag = 'smem constant byte address 0x4 - core index']
  #allocation1 [shape = 'u32[144,128]{1,0:T(1,128)}', space=vmem, size = 0x12000, scoped, tag = 'internal scratch']
  %s0 = inlined_call_operand.vmem [shape: f32[2,4,3], index: 0, kind: input, shape index: {}]
  %s1 = inlined_call_operand.vmem [shape: f32[2,3,16], index: 1, kind: input, shape index: {}]
  %s2 = inlined_call_operand.vmem [shape: f32[2,4,16], index: 2, kind: output, shape index: {}]
  %s3 = sld [smem:[#allocation0]]
  $region41: #{transition_down.2} parent=0
    _
  %s5 = ssub.s32 1, %s3
  %s6 = scalar_select 0, %s5, %s3
  loop: start=0, step=1, limit=4
  $region2: #{transition_down.2} parent=0 // loop_pre_header
    _
  $region3: #{transition_down.2} parent=0 // loop_header
    %s8 = sphi 0, %s12
    %p9 = scmp.ge.s32.totalorder %s8, 4
    %s15 = sphi 0, %s27
    %s16 = sphi 0, %s23
    %s17 = sphi 0, %s15
    %s18 = sphi 0, %s16
    %s19 = sphi 0, %s17
    %s20 = sphi 0, %s18
    %s30 = sphi 0, %s32
    %s33 = sphi 0, %s30
    %s34 = sphi 0, %s33
    %s50 = sphi 0, %s34
    %s58 = sphi 0, %s60
    %s61 = sphi 0, %s58
    %s62 = sphi 0, %s61
    %s78 = sphi 0, %s62
    %s86 = sphi 0, %s88
    %s89 = sphi 0, %s86
    %s90 = sphi 0, %s89
    %s106 = sphi 0, %s90
  $region4: #{transition_down.2} parent=0 // loop_header_branch
    %11 = sbr.rel (%p9) target = $region8
  $region5: #{transition_down.2} parent=0 // loop_body
    %s13 = ssub.s32 %s8, 1
    %s14 = ssub.s32 %s8, 2
    %s21 = sadd.s32 1, %s16
    %p22 = scmp.ge.s32.totalorder %s21, 1
    %s23 = scalar_select %p22, 0, %s21
    %s24 = sadd.s32 1, %s15
    %s25 = scalar_select %p22, %s24, %s15
    %p26 = scmp.ge.s32.totalorder %s25, 2
    %s27 = scalar_select %p26, 0, %s25
    %s28 = ssub.s32 %s15, %s27
    %p29 = scmp.eq.s32.totalorder %s28, 0
    %s31 = sadd.s32 %s30, 1
    %s32 = scalar_select %p29, %s30, %s31
    %p35 = pneg %p29
    %p36 = scmp.eq.s32.totalorder %s8, 1
    %p37 = por %p35, %p36
    %p38 = scmp.ne.s32.totalorder %s30, %s33
    %p39 = scmp.eq.s32.totalorder %s8, 0
    %p40 = por %p38, %p39
    %p41 = scmp.ne.s32.totalorder %s30, %s33
    %p42 = scmp.eq.s32.totalorder %s13, 1
    %p43 = por %p41, %p42
    %p44 = scmp.ne.s32.totalorder %s33, %s34
    %p45 = scmp.eq.s32.totalorder %s13, 0
    %p46 = por %p44, %p45
    %p47 = scmp.ne.s32.totalorder %s33, %s34
    %p48 = scmp.eq.s32.totalorder %s14, 1
    %p49 = por %p47, %p48
    %p51 = scmp.ne.s32.totalorder %s34, %s50
    %p52 = scmp.eq.s32.totalorder %s14, 0
    %p53 = por %p51, %p52
    %s54 = ssub.s32 %s15, %s27
    %s55 = ssub.s32 %s16, %s23
    %s56 = sor.u32 %s54, %s55
    %p57 = scmp.eq.s32.totalorder %s56, 0
    %s59 = sadd.s32 %s58, 1
    %s60 = scalar_select %p57, %s58, %s59
    %p63 = pneg %p57
    %p64 = scmp.eq.s32.totalorder %s8, 1
    %p65 = por %p63, %p64
    %p66 = scmp.ne.s32.totalorder %s58, %s61
    %p67 = scmp.eq.s32.totalorder %s8, 0
    %p68 = por %p66, %p67
    %p69 = scmp.ne.s32.totalorder %s58, %s61
    %p70 = scmp.eq.s32.totalorder %s13, 1
    %p71 = por %p69, %p70
    %p72 = scmp.ne.s32.totalorder %s61, %s62
    %p73 = scmp.eq.s32.totalorder %s13, 0
    %p74 = por %p72, %p73
    %p75 = scmp.ne.s32.totalorder %s61, %s62
    %p76 = scmp.eq.s32.totalorder %s14, 1
    %p77 = por %p75, %p76
    %p79 = scmp.ne.s32.totalorder %s62, %s78
    %p80 = scmp.eq.s32.totalorder %s14, 0
    %p81 = por %p79, %p80
    %s82 = ssub.s32 %s15, %s27
    %s83 = ssub.s32 %s16, %s23
    %s84 = sor.u32 %s82, %s83
    %p85 = scmp.eq.s32.totalorder %s84, 0
    %s87 = sadd.s32 %s86, 1
    %s88 = scalar_select %p85, %s86, %s87
    %p91 = pneg %p85
    %p92 = scmp.eq.s32.totalorder %s8, 1
    %p93 = por %p91, %p92
    %p94 = scmp.ne.s32.totalorder %s86, %s89
    %p95 = scmp.eq.s32.totalorder %s8, 0
    %p96 = por %p94, %p95
    %p97 = scmp.ne.s32.totalorder %s86, %s89
    %p98 = scmp.eq.s32.totalorder %s13, 1
    %p99 = por %p97, %p98
    %p100 = scmp.ne.s32.totalorder %s89, %s90
    %p101 = scmp.eq.s32.totalorder %s13, 0
    %p102 = por %p100, %p101
    %p103 = scmp.ne.s32.totalorder %s89, %s90
    %p104 = scmp.eq.s32.totalorder %s14, 1
    %p105 = por %p103, %p104
    %p107 = scmp.ne.s32.totalorder %s90, %s106
    %p108 = scmp.eq.s32.totalorder %s14, 0
    %p109 = por %p107, %p108
    %p110 = scmp.le.s32.totalorder 1, %s8
    %p111 = scmp.lt.s32.totalorder %s8, 3
    %p112 = pnand %p110, %p111
    %p113 = pneg %p112
    // Predicated region
    $region9: #{transition_down.2} parent=5 // pred_check
      _
    $region10: #{transition_down.2} parent=5 // pred_check_branch
      %115 = sbr.rel (%p112) target = $region12
    $region11: #{transition_down.2} parent=5 // pred_region
      %s116 = ssub.s32 %s8, 1
    $region12: #{transition_down.2} parent=5 // pred_fallthru
      _
    %p117 = scmp.lt.s32.totalorder %s8, 2
    // Predicated region
    $region13: #{transition_down.2} parent=5 // pred_check
      %p118 = pneg %p117
    $region14: #{transition_down.2} parent=5 // pred_check_branch
      %120 = sbr.rel (%p118) target = $region16
    $region15: #{transition_down.2} parent=5 // pred_region
      // Predicated region
      $region17: #{transition_down.2} parent=15 // pred_check
        %p121 = pneg %p40
      $region18: #{transition_down.2} parent=15 // pred_check_branch
        %123 = sbr.rel (%p121) target = $region20
      $region19: #{transition_down.2} parent=15 // pred_region
        %p124 = scmp.lt.s32.totalorder %s15, 1
        %s125 = scalar_select %p124, %s15, 1
        %s126 = smul.addr %s125, 4
        %s127 = scalar_lea.vmem %s0, %s126
      $region20: #{transition_down.2} parent=15 // pred_fallthru
        _
      // Predicated region
      $region21: #{transition_down.2} parent=15 // pred_check
        %p128 = pneg %p68
      $region22: #{transition_down.2} parent=15 // pred_check_branch
        %130 = sbr.rel (%p128) target = $region24
      $region23: #{transition_down.2} parent=15 // pred_region
        %p131 = scmp.lt.s32.totalorder %s15, 1
        %s132 = scalar_select %p131, %s15, 1
        %p133 = scmp.lt.s32.totalorder %s16, 0
        %s134 = scalar_select %p133, %s16, 0
        %s135 = sadd.s32 %s134, %s132
        %s136 = smul.addr %s135, 4
        %s137 = scalar_lea.vmem %s1, %s136
      $region24: #{transition_down.2} parent=15 // pred_fallthru
        _
    $region16: #{transition_down.2} parent=5 // pred_fallthru
      _
    %p138 = scmp.le.s32.totalorder 1, %s8
    %p139 = scmp.lt.s32.totalorder %s8, 3
    %p140 = pnand %p138, %p139
    %p141 = pneg %p140
    // Predicated region
    $region25: #{transition_down.2} parent=5 // pred_check
      _
    $region26: #{transition_down.2} parent=5 // pred_check_branch
      %143 = sbr.rel (%p140) target = $region28
    $region27: #{transition_down.2} parent=5 // pred_region
      %s144 = ssub.s32 %s8, 1
      %p145 = scmp.lt.s32.totalorder %s17, 1
      %s146 = scalar_select %p145, %s17, 1
      %s147 = smul.addr %s146, 4
      %s148 = scalar_lea.vmem %s0, %s147
      %p149 = pneg %p46
      %p150 = pneg %p43
      %p151 = scmp.lt.s32.totalorder %s17, 1
      %s152 = scalar_select %p151, %s17, 1
      %p153 = scmp.lt.s32.totalorder %s18, 0
      %s154 = scalar_select %p153, %s18, 0
      %s155 = sadd.s32 %s154, %s152
      %s156 = smul.addr %s155, 4
      %s157 = scalar_lea.vmem %s1, %s156
      %p158 = pneg %p74
      %p159 = pneg %p71
      %p160 = pneg %p102
      %p161 = pneg %p99
      %p162 = scmp.lt.s32.totalorder %s17, 1
      %s163 = scalar_select %p162, %s17, 1
      %p164 = scmp.lt.s32.totalorder %s18, 0
      %s165 = scalar_select %p164, %s18, 0
      %s166 = sadd.s32 %s165, %s163
      %s167 = smul.addr %s166, 4
      %s168 = scalar_lea.vmem %s2, %s167
      %p169 = scmp.lt.s32.totalorder %s17, 1
      %s170 = scalar_select %p169, %s17, 1
      %s171 = smul.addr %s170, 4
      %s172 = scalar_lea.vmem %s0, %s171
      %p173 = scmp.lt.s32.totalorder %s17, 1
      %s174 = scalar_select %p173, %s17, 1
      %p175 = scmp.lt.s32.totalorder %s18, 0
      %s176 = scalar_select %p175, %s18, 0
      %s177 = sadd.s32 %s176, %s174
      %s178 = smul.addr %s177, 4
      %s179 = scalar_lea.vmem %s1, %s178
      %p180 = scmp.lt.s32.totalorder %s17, 1
      %s181 = scalar_select %p180, %s17, 1
      %p182 = scmp.lt.s32.totalorder %s18, 0
      %s183 = scalar_select %p182, %s18, 0
      %s184 = sadd.s32 %s183, %s181
      %s185 = smul.addr %s184, 4
      %s186 = scalar_lea.vmem %s2, %s185
      %v187 = vld [vmem:[%s172] sm:$0xf]
      %v188 = vld [vmem:[%s179] sm:$0x7]
      %190 = vset.pattern.permute.xlu0 0
      %191 = vperm.xlu0 %190, %v187
      %v192 = vpop.permute.xlu0 %191
      %v194 = vlaneseq
      %v195 = vshrl.u32 %v194, 7
      %v196 = vsub.s32 0, %v195
      %v197 = vrot.slane %v188, %v196
      %v198 = vsub.f32 %v192, %v197
      %v199 = vmul.f32 %v198, %v198
      %200 = vset.pattern.permute.xlu0 1
      %201 = vperm.xlu0 %200, %v187
      %v202 = vpop.permute.xlu0 %201
      %v204 = vlaneseq
      %v205 = vshrl.u32 %v204, 7
      %v206 = vsub.s32 1, %v205
      %v207 = vrot.slane %v188, %v206
      %v208 = vsub.f32 %v202, %v207
      %v209 = vmul.f32 %v208, %v208
      %v210 = vadd.f32 %v199, %v209
      %211 = vset.pattern.permute.xlu0 2
      %212 = vperm.xlu0 %211, %v187
      %v213 = vpop.permute.xlu0 %212
      %v215 = vlaneseq
      %v216 = vshrl.u32 %v215, 7
      %v217 = vsub.s32 2, %v216
      %v218 = vrot.slane %v188, %v217
      %v219 = vsub.f32 %v213, %v218
      %v220 = vmul.f32 %v219, %v219
      %v221 = vadd.f32 %v210, %v220
      %vm222 = vcmask 125952
      %223 = vst.msk [vmem:[%s186] sm:$0xf] %vm222, %v221
      %p224 = scmp.lt.s32.totalorder %s17, 1
      %s225 = scalar_select %p224, %s17, 1
      %p226 = scmp.lt.s32.totalorder %s18, 0
      %s227 = scalar_select %p226, %s18, 0
      %s228 = sadd.s32 %s227, %s225
      %s229 = smul.addr %s228, 4
      %s230 = scalar_lea.vmem %s2, %s229
      // Predicated region
      $region29: #{transition_down.2} parent=27 // pred_check
        %p231 = pneg %p99
      $region30: #{transition_down.2} parent=27 // pred_check_branch
        %233 = sbr.rel (%p231) target = $region32
      $region31: #{transition_down.2} parent=27 // pred_region
        _
      $region32: #{transition_down.2} parent=27 // pred_fallthru
        _
    $region28: #{transition_down.2} parent=5 // pred_fallthru
      _
    %p234 = scmp.le.s32.totalorder 2, %s8
    // Predicated region
    $region33: #{transition_down.2} parent=5 // pred_check
      %p235 = pneg %p234
    $region34: #{transition_down.2} parent=5 // pred_check_branch
      %237 = sbr.rel (%p235) target = $region36
    $region35: #{transition_down.2} parent=5 // pred_region
      %s238 = ssub.s32 %s8, 2
      // Predicated region
      $region37: #{transition_down.2} parent=35 // pred_check
        %p239 = pneg %p105
      $region38: #{transition_down.2} parent=35 // pred_check_branch
        %241 = sbr.rel (%p239) target = $region40
      $region39: #{transition_down.2} parent=35 // pred_region
        %p242 = scmp.lt.s32.totalorder %s19, 1
        %s243 = scalar_select %p242, %s19, 1
        %p244 = scmp.lt.s32.totalorder %s20, 0
        %s245 = scalar_select %p244, %s20, 0
        %s246 = sadd.s32 %s245, %s243
        %s247 = smul.addr %s246, 4
        %s248 = scalar_lea.vmem %s2, %s247
      $region40: #{transition_down.2} parent=35 // pred_fallthru
        _
    $region36: #{transition_down.2} parent=5 // pred_fallthru
      _
  $region6: #{transition_down.2} parent=0 // loop_footer
    %s12 = sadd.s32 1, %s8
  $region7: #{transition_down.2} parent=0 // loop_footer_branch
    %7 = sbr.rel target = $region3
  $region8: #{transition_down.2} parent=0 // loop_exit
    _

// kernel: transition_down.3
$region0: #{transition_down.3}
  #allocation0 [shape = 'u32[]', space=smem, size = 0x4, offset = 0x4, fixed_abs, tag = 'smem constant byte address 0x4 - core index']
  #allocation1 [shape = 'u32[144,128]{1,0:T(1,128)}', space=vmem, size = 0x12000, scoped, tag = 'internal scratch']
  %s0 = inlined_call_operand.vmem [shape: bf16[64,24], index: 0, kind: input, shape index: {}]
  %s1 = inlined_call_operand.vmem [shape: bf16[24,32], index: 1, kind: input, shape index: {}]
  %s2 = inlined_call_operand.vmem [shape: f32[1,32], index: 2, kind: input, shape index: {}]
  %s3 = inlined_call_operand.vmem [shape: bf16[32,32], index: 3, kind: input, shape index: {}]
  %s4 = inlined_call_operand.vmem [shape: f32[1,32], index: 4, kind: input, shape index: {}]
  %s5 = inlined_call_operand.hbm [shape: f32[8,32], index: 5, kind: output, shape index: {}]
  %s6 = sld [smem:[#allocation0]]
  $region30: #{transition_down.3} parent=0
    _
  %s8 = ssub.s32 1, %s6
  %s9 = scalar_select 0, %s8, %s6
  $region1: #{transition_down.3} parent=0
    #allocation2 [shape = 'u8[4096]{0}', space=vmem, size = 0x1000, scoped, tag = 'output window, operand 0, single buffered']
    #allocation3 [shape = 's32[1]{0}', space=sflag, size = 0x4, scoped, tag = 'scoped memory for transition_down.3']
    %10 = vsyncpa [#allocation3], 0
    // Predicated region
    $region2: #{transition_down.3} parent=1 // pred_check
      _
    $region3: #{transition_down.3} parent=1 // pred_check_branch
      %12 = sbr.rel (0) target = $region5
    $region4: #{transition_down.3} parent=1 // pred_region
      _
    $region5: #{transition_down.3} parent=1 // pred_fallthru
      _
    // Predicated region
    $region6: #{transition_down.3} parent=1 // pred_check
      _
    $region7: #{transition_down.3} parent=1 // pred_check_branch
      %14 = sbr.rel (0) target = $region9
    $region8: #{transition_down.3} parent=1 // pred_region
      _
    $region9: #{transition_down.3} parent=1 // pred_fallthru
      _
    // Predicated region
    $region10: #{transition_down.3} parent=1 // pred_check
      _
    $region11: #{transition_down.3} parent=1 // pred_check_branch
      %16 = sbr.rel (0) target = $region13
    $region12: #{transition_down.3} parent=1 // pred_region
      _
    $region13: #{transition_down.3} parent=1 // pred_fallthru
      _
    // Predicated region
    $region14: #{transition_down.3} parent=1 // pred_check
      _
    $region15: #{transition_down.3} parent=1 // pred_check_branch
      %18 = sbr.rel (0) target = $region17
    $region16: #{transition_down.3} parent=1 // pred_region
      _
    $region17: #{transition_down.3} parent=1 // pred_fallthru
      _
    // Predicated region
    $region18: #{transition_down.3} parent=1 // pred_check
      _
    $region19: #{transition_down.3} parent=1 // pred_check_branch
      %20 = sbr.rel (0) target = $region21
    $region20: #{transition_down.3} parent=1 // pred_region
      _
    $region21: #{transition_down.3} parent=1 // pred_fallthru
      _
    %v22 = vld [vmem:[%s0] sm:$0xf]
    %v23 = vld [vmem:[%s0 + $0x4] sm:$0xf]
    %v24 = vld [vmem:[%s0 + $0x8] sm:$0xf]
    %v25 = vld [vmem:[%s0 + $0xc] sm:$0xf]
    %v26 = vld [vmem:[%s0 + $0x10] sm:$0xf]
    %v27 = vld [vmem:[%s0 + $0x14] sm:$0xf]
    %v28 = vld [vmem:[%s0 + $0x18] sm:$0xf]
    %v29 = vld [vmem:[%s0 + $0x1c] sm:$0xf]
    %v30 = vld [vmem:[%s1] sm:$0xf]
    %v31 = vld [vmem:[%s1 + $0x4] sm:$0xf]
    %v32 = vld [vmem:[%s1 + $0x8] sm:$0xf]
    %v33 = vld [vmem:[%s2] sm:$0x1]
    %v35 = vlaneseq
    %v36 = vshrl.u32 %v35, 7
    %v37 = vsub.s32 0, %v36
    %v38 = vrot.slane %v33, %v37
    %v48 = vunpack.c.l.b16 %v22
    %v49 = vunpack.c.l.b16 %v23
    %v50 = vunpack.c.l.b16 %v24
    %v51 = vunpack.c.l.b16 %v25
    %v52 = vunpack.c.l.b16 %v26
    %v53 = vunpack.c.l.b16 %v27
    %v54 = vunpack.c.l.b16 %v28
    %v55 = vunpack.c.l.b16 %v29
    %v56 = vpack.c.b16 %v49, %v48
    %v57 = vpack.c.b16 %v51, %v50
    %v58 = vpack.c.b16 %v53, %v52
    %v59 = vpack.c.b16 %v55, %v54
    %v63 = vunpack.c.l.b16 %v30
    %v64 = vunpack.c.l.b16 %v31
    %v65 = vunpack.c.l.b16 %v32
    %v66 = vpack.c.b16 %v64, %v63
    %v67 = vpack.c.b16 %v65, %v65
    %vm69 = vcmask 195584
    %v71 = vsel %vm69, %v56, 0
    %v74 = vsel %vm69, %v57, 0
    %v77 = vsel %vm69, %v58, 0
    %v80 = vsel %vm69, %v59, 0
    %vm82 = vcmask 1043456
    %v84 = vsel %vm82, %v67, 0
    %86 = vmatprep.subr.bf16.mxu0 0
    %87 = vmatpush1.bf16.msra.mxu0 %v66
    %88 = vmatprep.subr.bf16.mxu0 0
    %89 = vmatpush1.bf16.msra.mxu0 %v84
    %90 = vmatprep.subr.bf16.mxu0 0
    %91 = vmatpush1.bf16.msra.mxu0 0
    %92 = vmatprep.subr.bf16.mxu0 0
    %93 = vmatpush1.bf16.msra.mxu0 0
    %94 = vmatprep.subr.bf16.mxu0 0
    %95 = vmatpush1.bf16.msra.mxu0 0
    %96 = vmatprep.subr.bf16.mxu0 0
    %97 = vmatpush1.bf16.msra.mxu0 0
    %98 = vmatprep.subr.bf16.mxu0 0
    %99 = vmatpush1.bf16.msra.mxu0 0
    %100 = vmatprep.subr.bf16.mxu0 0
    %101 = vmatpush1.bf16.msra.mxu0 0
    %102 = vmatprep.subr.bf16.mxu0 0
    %103 = vmatpush1.bf16.msra.mxu0 0
    %104 = vmatprep.subr.bf16.mxu0 0
    %105 = vmatpush1.bf16.msra.mxu0 0
    %106 = vmatprep.subr.bf16.mxu0 0
    %107 = vmatpush1.bf16.msra.mxu0 0
    %108 = vmatprep.subr.bf16.mxu0 0
    %109 = vmatpush1.bf16.msra.mxu0 0
    %110 = vmatprep.subr.bf16.mxu0 0
    %111 = vmatpush1.bf16.msra.mxu0 0
    %112 = vmatprep.subr.bf16.mxu0 0
    %113 = vmatpush1.bf16.msra.mxu0 0
    %114 = vmatprep.subr.bf16.mxu0 0
    %115 = vmatpush1.bf16.msra.mxu0 0
    %116 = vmatprep.subr.bf16.mxu0 0
    %117 = vmatpush1.bf16.msra.mxu0 0
    %118 = vmatprep.mubr.bf16.mxu0 0
    %119 = vmatmul.mubr.bf16.gmra.mrb[0].mxu0 %v71
    %v120 = vpop.f32.mrb[0].mxu0
    %v121 = vadd.f32 %v38, %v120
    %v122 = vpop.f32.mrb[0].mxu0
    %v123 = vpop.f32.mrb[0].mxu0
    %v124 = vadd.f32 %v38, %v123
    %v125 = vpop.f32.mrb[0].mxu0
    %126 = vmatprep.mubr.bf16.mxu0 0
    %127 = vmatmul.mubr.bf16.gmra.mrb[0].mxu0 %v74
    %v128 = vpop.f32.mrb[0].mxu0
    %v129 = vadd.f32 %v38, %v128
    %v130 = vpop.f32.mrb[0].mxu0
    %v131 = vpop.f32.mrb[0].mxu0
    %v132 = vadd.f32 %v38, %v131
    %v133 = vpop.f32.mrb[0].mxu0
    %134 = vmatprep.mubr.bf16.mxu0 0
    %135 = vmatmul.mubr.bf16.gmra.mrb[0].mxu0 %v77
    %v136 = vpop.f32.mrb[0].mxu0
    %v137 = vadd.f32 %v38, %v136
    %v138 = vpop.f32.mrb[0].mxu0
    %v139 = vpop.f32.mrb[0].mxu0
    %v140 = vadd.f32 %v38, %v139
    %v141 = vpop.f32.mrb[0].mxu0
    %142 = vmatprep.mubr.bf16.mxu0 0
    %143 = vmatmul.mubr.bf16.gmra.mrb[0].mxu0 %v80
    %v144 = vpop.f32.mrb[0].mxu0
    %v145 = vadd.f32 %v38, %v144
    %v146 = vpop.f32.mrb[0].mxu0
    %v147 = vpop.f32.mrb[0].mxu0
    %v148 = vadd.f32 %v38, %v147
    %v149 = vpop.f32.mrb[0].mxu0
    %150 = vdwg.mxu0
    %v151 = vmax.f32 %v121, 0.0
    %v152 = vmax.f32 %v124, 0.0
    %v153 = vmax.f32 %v129, 0.0
    %v154 = vmax.f32 %v132, 0.0
    %v155 = vmax.f32 %v137, 0.0
    %v156 = vmax.f32 %v140, 0.0
    %v157 = vmax.f32 %v145, 0.0
    %v158 = vmax.f32 %v148, 0.0
    %v159 = vpack.c.bf16 %v152, %v151
    %v160 = vpack.c.bf16 %v154, %v153
    %v161 = vpack.c.bf16 %v156, %v155
    %v162 = vpack.c.bf16 %v158, %v157
    %v163 = vld [vmem:[%s3] sm:$0xf]
    %v164 = vld [vmem:[%s3 + $0x4] sm:$0xf]
    %v165 = vld [vmem:[%s3 + $0x8] sm:$0xf]
    %v166 = vld [vmem:[%s3 + $0xc] sm:$0xf]
    %v167 = vld [vmem:[%s4] sm:$0x1]
    %v169 = vlaneseq
    %v170 = vshrl.u32 %v169, 7
    %v171 = vsub.s32 0, %v170
    %v172 = vrot.slane %v167, %v171
    %v178 = vunpack.c.l.b16 %v163
    %v179 = vunpack.c.l.b16 %v164
    %v180 = vunpack.c.l.b16 %v165
    %v181 = vunpack.c.l.b16 %v166
    %v182 = vpack.c.b16 %v179, %v178
    %v183 = vpack.c.b16 %v181, %v180
    %vm186 = vcmask 261120
    %v188 = vsel %vm186, %v159, 0
    %v191 = vsel %vm186, %v160, 0
    %v194 = vsel %vm186, %v161, 0
    %v197 = vsel %vm186, %v162, 0
    %199 = vmatprep.subr.bf16.mxu0 0
    %200 = vmatpush1.bf16.msra.mxu0 %v182
    %201 = vmatprep.subr.bf16.mxu0 0
    %202 = vmatpush1.bf16.msra.mxu0 %v183
    %203 = vmatprep.subr.bf16.mxu0 0
    %204 = vmatpush1.bf16.msra.mxu0 0
    %205 = vmatprep.subr.bf16.mxu0 0
    %206 = vmatpush1.bf16.msra.mxu0 0
    %207 = vmatprep.subr.bf16.mxu0 0
    %208 = vmatpush1.bf16.msra.mxu0 0
    %209 = vmatprep.subr.bf16.mxu0 0
    %210 = vmatpush1.bf16.msra.mxu0 0
    %211 = vmatprep.subr.bf16.mxu0 0
    %212 = vmatpush1.bf16.msra.mxu0 0
    %213 = vmatprep.subr.bf16.mxu0 0
    %214 = vmatpush1.bf16.msra.mxu0 0
    %215 = vmatprep.subr.bf16.mxu0 0
    %216 = vmatpush1.bf16.msra.mxu0 0
    %217 = vmatprep.subr.bf16.mxu0 0
    %218 = vmatpush1.bf16.msra.mxu0 0
    %219 = vmatprep.subr.bf16.mxu0 0
    %220 = vmatpush1.bf16.msra.mxu0 0
    %221 = vmatprep.subr.bf16.mxu0 0
    %222 = vmatpush1.bf16.msra.mxu0 0
    %223 = vmatprep.subr.bf16.mxu0 0
    %224 = vmatpush1.bf16.msra.mxu0 0
    %225 = vmatprep.subr.bf16.mxu0 0
    %226 = vmatpush1.bf16.msra.mxu0 0
    %227 = vmatprep.subr.bf16.mxu0 0
    %228 = vmatpush1.bf16.msra.mxu0 0
    %229 = vmatprep.subr.bf16.mxu0 0
    %230 = vmatpush1.bf16.msra.mxu0 0
    %231 = vmatprep.mubr.bf16.mxu0 0
    %232 = vmatmul.mubr.bf16.gmra.mrb[0].mxu0 %v188
    %v233 = vpop.f32.mrb[0].mxu0
    %v234 = vadd.f32 %v172, %v233
    %v235 = vpop.f32.mrb[0].mxu0
    %v236 = vpop.f32.mrb[0].mxu0
    %v237 = vadd.f32 %v172, %v236
    %v238 = vpop.f32.mrb[0].mxu0
    %239 = vmatprep.mubr.bf16.mxu0 0
    %240 = vmatmul.mubr.bf16.gmra.mrb[0].mxu0 %v191
    %v241 = vpop.f32.mrb[0].mxu0
    %v242 = vadd.f32 %v172, %v241
    %v243 = vpop.f32.mrb[0].mxu0
    %v244 = vpop.f32.mrb[0].mxu0
    %v245 = vadd.f32 %v172, %v244
    %v246 = vpop.f32.mrb[0].mxu0
    %247 = vmatprep.mubr.bf16.mxu0 0
    %248 = vmatmul.mubr.bf16.gmra.mrb[0].mxu0 %v194
    %v249 = vpop.f32.mrb[0].mxu0
    %v250 = vadd.f32 %v172, %v249
    %v251 = vpop.f32.mrb[0].mxu0
    %v252 = vpop.f32.mrb[0].mxu0
    %v253 = vadd.f32 %v172, %v252
    %v254 = vpop.f32.mrb[0].mxu0
    %255 = vmatprep.mubr.bf16.mxu0 0
    %256 = vmatmul.mubr.bf16.gmra.mrb[0].mxu0 %v197
    %v257 = vpop.f32.mrb[0].mxu0
    %v258 = vadd.f32 %v172, %v257
    %v259 = vpop.f32.mrb[0].mxu0
    %v260 = vpop.f32.mrb[0].mxu0
    %v261 = vadd.f32 %v172, %v260
    %v262 = vpop.f32.mrb[0].mxu0
    %263 = vdwg.mxu0
    %v264 = vmax.f32 %v234, 0.0
    %v265 = vmax.f32 %v237, 0.0
    %v266 = vmax.f32 %v242, 0.0
    %v267 = vmax.f32 %v245, 0.0
    %v268 = vmax.f32 %v250, 0.0
    %v269 = vmax.f32 %v253, 0.0
    %v270 = vmax.f32 %v258, 0.0
    %v271 = vmax.f32 %v261, 0.0
    %v272 = vsel %vm186, %v264, -inf
    %v273 = vrot.slane %v272, 4
    %v274 = vmax.f32 %v272, %v273
    %v275 = vrot.slane %v274, 2
    %v276 = vmax.f32 %v274, %v275
    %v277 = vrot.slane %v276, 1
    %v278 = vmax.f32 %v276, %v277
    %v279 = vsel %vm186, %v265, -inf
    %v280 = vrot.slane %v279, 4
    %v281 = vmax.f32 %v279, %v280
    %v282 = vrot.slane %v281, 2
    %v283 = vmax.f32 %v281, %v282
    %v284 = vrot.slane %v283, 1
    %v285 = vmax.f32 %v283, %v284
    %v286 = vsel %vm186, %v266, -inf
    %v287 = vrot.slane %v286, 4
    %v288 = vmax.f32 %v286, %v287
    %v289 = vrot.slane %v288, 2
    %v290 = vmax.f32 %v288, %v289
    %v291 = vrot.slane %v290, 1
    %v292 = vmax.f32 %v290, %v291
    %v293 = vsel %vm186, %v267, -inf
    %v294 = vrot.slane %v293, 4
    %v295 = vmax.f32 %v293, %v294
    %v296 = vrot.slane %v295, 2
    %v297 = vmax.f32 %v295, %v296
    %v298 = vrot.slane %v297, 1
    %v299 = vmax.f32 %v297, %v298
    %v300 = vsel %vm186, %v268, -inf
    %v301 = vrot.slane %v300, 4
    %v302 = vmax.f32 %v300, %v301
    %v303 = vrot.slane %v302, 2
    %v304 = vmax.f32 %v302, %v303
    %v305 = vrot.slane %v304, 1
    %v306 = vmax.f32 %v304, %v305
    %v307 = vsel %vm186, %v269, -inf
    %v308 = vrot.slane %v307, 4
    %v309 = vmax.f32 %v307, %v308
    %v310 = vrot.slane %v309, 2
    %v311 = vmax.f32 %v309, %v310
    %v312 = vrot.slane %v311, 1
    %v313 = vmax.f32 %v311, %v312
    %v314 = vsel %vm186, %v270, -inf
    %v315 = vrot.slane %v314, 4
    %v316 = vmax.f32 %v314, %v315
    %v317 = vrot.slane %v316, 2
    %v318 = vmax.f32 %v316, %v317
    %v319 = vrot.slane %v318, 1
    %v320 = vmax.f32 %v318, %v319
    %v321 = vsel %vm186, %v271, -inf
    %v322 = vrot.slane %v321, 4
    %v323 = vmax.f32 %v321, %v322
    %v324 = vrot.slane %v323, 2
    %v325 = vmax.f32 %v323, %v324
    %v326 = vrot.slane %v325, 1
    %v327 = vmax.f32 %v325, %v326
    %vm336 = vcmask 1041409
    %v337 = vsel %vm336, %v285, %v278
    %vm338 = vcmask 1042434
    %v339 = vsel %vm338, %v292, %v337
    %vm340 = vcmask 1043459
    %v341 = vsel %vm340, %v299, %v339
    %vm342 = vcmask 1044484
    %v343 = vsel %vm342, %v306, %v341
    %vm344 = vcmask 1045509
    %v345 = vsel %vm344, %v313, %v343
    %vm346 = vcmask 1046534
    %v347 = vsel %vm346, %v320, %v345
    %vm348 = vcmask 1047559
    %v349 = vsel %vm348, %v327, %v347
    %351 = vst.msk [vmem:[#allocation2] sm:$0xff] %vm186, %v349
    // Predicated region
    $region22: #{transition_down.3} parent=1 // pred_check
      _
    $region23: #{transition_down.3} parent=1 // pred_check_branch
      %353 = sbr.rel (0) target = $region25
    $region24: #{transition_down.3} parent=1 // pred_region
      %s355 = ssub.s32 128, 128
      %356 = vsyncadd [#allocation3], %s355
      %s358 = sshll.u32 [#allocation2], 4
      %s359 = int_to_ptr.vmem [resolvable:$true] %s358
      %361 = dma.vmem_to_hbm [thread:$0]  %s359, 128, %s5, [#allocation3]
    $region25: #{transition_down.3} parent=1 // pred_fallthru
      _
    // Predicated region
    $region26: #{transition_down.3} parent=1 // pred_check
      _
    $region27: #{transition_down.3} parent=1 // pred_check_branch
      %363 = sbr.rel (0) target = $region29
    $region28: #{transition_down.3} parent=1 // pred_region
      %364 = dma.done [#allocation3], 128
    $region29: #{transition_down.3} parent=1 // pred_fallthru
      _
    %365 = vsyncpa [#allocation3], 1

</llo_original>
